<compile_context>
chip_gen: v6e
topology: v6e:2x2x1
jax: 0.10.0
libtpu: 0.0.40
codegen_flags: <defaults>
</compile_context>

<pallas_src>
import jax
import jax.numpy as jnp
from jax.experimental import pallas as pl
from jax.experimental.pallas import tpu as pltpu


def _round_up(x, m):
    return ((x + m - 1) // m) * m


def _make_gather_kernel(n_v, tile_v, grid_v):
    """Builds: out[t, :] = table[clip(ids[t]), :] via one-hot @ table on the MXU."""
    max_id = n_v - 1

    if grid_v == 1:
        # Whole table in VMEM: no accumulator scratch, direct dense store.
        def kernel(ids_ref, table_ref, out_ref):
            tile_t = out_ref.shape[0]
            ids = jnp.clip(ids_ref[...], 0, max_id)                   # (tile_t, 1)
            col = jax.lax.broadcasted_iota(jnp.int32, (tile_t, tile_v), 1)
            onehot = (col == ids).astype(table_ref.dtype)             # exact 0/1
            out_ref[...] = jnp.dot(
                onehot, table_ref[...], preferred_element_type=jnp.float32
            ).astype(out_ref.dtype)
        return kernel

    # Streamed-table path: accumulate partial gathers over vocab tiles.
    def kernel(ids_ref, table_ref, out_ref, acc_ref):
        j = pl.program_id(1)
        tile_t = out_ref.shape[0]

        @pl.when(j == 0)
        def _():
            acc_ref[...] = jnp.zeros_like(acc_ref)

        ids = jnp.clip(ids_ref[...], 0, max_id)                       # (tile_t, 1)
        col = (jax.lax.broadcasted_iota(jnp.int32, (tile_t, tile_v), 1)
               + j * tile_v)
        onehot = (col == ids).astype(table_ref.dtype)
        acc_ref[...] += jnp.dot(onehot, table_ref[...],
                                preferred_element_type=jnp.float32)

        @pl.when(j == grid_v - 1)
        def _():
            out_ref[...] = acc_ref[...].astype(out_ref.dtype)
    return kernel


def embedding_lookup(ids, table, *, max_tile_t=256,
                     whole_table_vmem_budget=8 * 1024 * 1024,
                     vocab_block_bytes=2 * 1024 * 1024):
    """Pallas embedding gather: out[b, s, :] = table[ids[b, s], :]."""
    B, S = ids.shape
    n_V, n_d = table.shape
    itemsize = jnp.dtype(table.dtype).itemsize

    flat_ids = ids.reshape(-1)
    if flat_ids.dtype != jnp.int32:
        flat_ids = flat_ids.astype(jnp.int32)

    T = flat_ids.shape[0]
    tile_t = int(min(max_tile_t, _round_up(T, 8)))     # sublane-dense token tile
    T_pad = int(_round_up(T, tile_t))
    if T_pad != T:
        flat_ids = jnp.pad(flat_ids, (0, T_pad - T))   # pad ids -> row 0 (harmless)
    ids_2d = flat_ids.reshape(T_pad, 1)

    # Decide whether the whole table stays resident in VMEM or is streamed.
    table_bytes = n_V * n_d * itemsize
    if table_bytes <= whole_table_vmem_budget:
        tile_v, grid_v = n_V, 1
        table_p = table
    else:
        tile_v = max(8, (vocab_block_bytes // (n_d * itemsize)) // 8 * 8)
        n_V_pad = int(_round_up(n_V, tile_v))
        table_p = (jnp.pad(table, ((0, n_V_pad - n_V), (0, 0)))
                   if n_V_pad != n_V else table)
        grid_v = n_V_pad // tile_v

    kernel = _make_gather_kernel(n_V, tile_v, grid_v)
    grid = (T_pad // tile_t, grid_v)
    scratch_shapes = ([pltpu.VMEM((tile_t, n_d), jnp.float32)]
                      if grid_v > 1 else [])

    out_flat = pl.pallas_call(
        kernel,
        out_shape=jax.ShapeDtypeStruct((T_pad, n_d), table.dtype),
        grid_spec=pltpu.PrefetchScalarGridSpec(
            num_scalar_prefetch=0,
            grid=grid,
            in_specs=[
                # token-id column for this token tile (same block across vocab axis)
                pl.BlockSpec((tile_t, 1), lambda i, j: (i, 0)),
                # embedding-table block: whole table (grid_v==1) or vocab slab j
                pl.BlockSpec((tile_v, n_d), lambda i, j: (j, 0)),
            ],
            out_specs=pl.BlockSpec((tile_t, n_d), lambda i, j: (i, 0)),
            scratch_shapes=scratch_shapes,
        ),
        compiler_params=pltpu.CompilerParams(
            dimension_semantics=("parallel", "arbitrary"),
        ),
    )(ids_2d, table_p)

    return out_flat[:T].reshape(B, S, n_d)


def make_embedding_params(key, n_words=62, n_d=128, normalize=True):
    """Deterministic synthetic init mirroring EmbeddingLayer.__init__.

    Vocabulary = n_words regular words + <oov> + <pad>  ->  n_V = n_words + 2.
    Weights ~ U(-0.25, 0.25), then each row divided by its L2 norm.
    """
    n_V = n_words + 2            # + <oov>, <pad>
    oovid = n_words
    padid = n_words + 1
    w = jax.random.uniform(key, (n_V, n_d), dtype=jnp.float32,
                           minval=-0.25, maxval=0.25)
    if normalize:
        norms = jnp.linalg.norm(w, ord=2, axis=1, keepdims=True)
        w = w / norms
    return w, oovid, padid


if __name__ == "__main__":
    key = jax.random.PRNGKey(0)
    k_w, k_ids = jax.random.split(key)

    # Small synthetic shapes: vocab 64 (62 words + oov + pad), hidden 128,
    # batch 2, seq 8  ->  16 tokens, a single grid step on the fast path.
    n_words, n_d = 62, 128
    B, S = 2, 8

    table, oovid, padid = make_embedding_params(k_w, n_words=n_words, n_d=n_d)
    n_V = table.shape[0]

    ids = jax.random.randint(k_ids, (B, S), 0, n_V, dtype=jnp.int32)
    # make sure oov / pad ids are exercised too
    ids = ids.at[0, 0].set(oovid).at[0, 1].set(padid)

    out = embedding_lookup(ids, table)
    out = jax.block_until_ready(out)

    # reference check: plain JAX gather (== PyTorch nn.Embedding forward)
    ref = table[ids]
    assert out.shape == (B, S, n_d)
    assert out.dtype == jnp.float32
    assert jnp.allclose(out, ref), "Pallas embedding gather mismatch"

    # exercise the streamed-table (vocab-tiled, accumulator) path too,
    # by forcing a tiny whole-table budget so grid_v > 1.
    out2 = embedding_lookup(ids, table,
                            whole_table_vmem_budget=1024,
                            vocab_block_bytes=16 * n_d * 4)
    out2 = jax.block_until_ready(out2)
    assert jnp.allclose(out2, ref), "Pallas tiled-vocab gather mismatch"

    print("KERNEL_OK")
</pallas_src>

<mosaic_0001>
module attributes {stable_mosaic.version = 11 : i64} {
  func.func @kernel(%arg0: i32, %arg1: i32, %arg2: memref<16x1xi32, #tpu.memory_space<vmem>>, %arg3: memref<64x128xf32, #tpu.memory_space<vmem>>, %arg4: memref<16x128xf32, #tpu.memory_space<vmem>>) attributes {dimension_semantics = [#tpu.dimension_semantics<parallel>, #tpu.dimension_semantics<arbitrary>], iteration_bounds = array<i64: 1, 1>, scalar_prefetch = 0 : i64, scratch_operands = 0 : i64, tpu.core_type = #tpu.core_type<tc>, window_params = [{transform_indices = @transform_0, window_bounds = array<i64: 16, 1>}, {transform_indices = @transform_1, window_bounds = array<i64: 64, 128>}, {transform_indices = @transform_2, window_bounds = array<i64: 16, 128>}]} {
    %c0 = arith.constant 0 : index
    %c0_0 = arith.constant 0 : index
    %0 = vector.load %arg2[%c0, %c0_0] : memref<16x1xi32, #tpu.memory_space<vmem>>, vector<16x1xi32>
    %c0_i32 = arith.constant 0 : i32
    %c63_i32 = arith.constant 63 : i32
    %1 = vector.broadcast %c0_i32 : i32 to vector<16x1xi32>
    %2 = arith.maxsi %1, %0 : vector<16x1xi32>
    %3 = vector.broadcast %c63_i32 : i32 to vector<16x1xi32>
    %4 = arith.minsi %3, %2 : vector<16x1xi32>
    %5 = tpu.iota {dimensions = array<i32: 1>} : vector<16x64xi32>
    %6 = vector.broadcast %4 : vector<16x1xi32> to vector<16x64xi32>
    %7 = arith.cmpi eq, %5, %6 : vector<16x64xi32>
    %8 = arith.extui %7 : vector<16x64xi1> to vector<16x64xi32>
    %9 = arith.sitofp %8 : vector<16x64xi32> to vector<16x64xf32>
    %c0_1 = arith.constant 0 : index
    %c0_2 = arith.constant 0 : index
    %10 = vector.load %arg3[%c0_1, %c0_2] : memref<64x128xf32, #tpu.memory_space<vmem>>, vector<64x128xf32>
    %cst = arith.constant dense<0.000000e+00> : vector<16x128xf32>
    %11 = tpu.matmul %9, %10, %cst {dimension_numbers = #tpu.dot_dimension_numbers<[1], [0], [0], [1], [0, 0, 1, 1], [], []>} : vector<16x64xf32>, vector<64x128xf32>, vector<16x128xf32> -> vector<16x128xf32>
    %c0_3 = arith.constant 0 : index
    %c0_4 = arith.constant 0 : index
    %12 = vector.load %arg4[%c0_3, %c0_4] : memref<16x128xf32, #tpu.memory_space<vmem>>, vector<16x128xf32>
    tpu.vector_store %arg4[%c0_3, %c0_4], %11 {strides = array<i32>} : memref<16x128xf32, #tpu.memory_space<vmem>>, vector<16x128xf32>,
    return
  }
  func.func @transform_0(%arg0: i32, %arg1: i32) -> (i32, i32) {
    %c0_i32 = arith.constant 0 : i32
    %c0_i32_0 = arith.constant 0 : i32
    return %arg0, %c0_i32 : i32, i32
  }
  func.func @transform_1(%arg0: i32, %arg1: i32) -> (i32, i32) {
    %c0_i32 = arith.constant 0 : i32
    %c0_i32_0 = arith.constant 0 : i32
    return %arg1, %c0_i32 : i32, i32
  }
  func.func @transform_2(%arg0: i32, %arg1: i32) -> (i32, i32) {
    %c0_i32 = arith.constant 0 : i32
    %c0_i32_0 = arith.constant 0 : i32
    return %arg0, %c0_i32 : i32, i32
  }
}

</mosaic_0001>

<llo_original>
// kernel: tpu_custom_call.1
$region0: #{tpu_custom_call.1}
  #allocation0 [shape = 'u32[]', space=smem, size = 0x4, offset = 0x4, fixed_abs, tag = 'smem constant byte address 0x4 - core index']
  #allocation1 [shape = 'u32[144,128]{1,0:T(1,128)}', space=vmem, size = 0x12000, scoped, tag = 'internal scratch']
  %s0 = inlined_call_operand.vmem [shape: s32[16,1], index: 0, kind: input, shape index: {}]
  %s1 = inlined_call_operand.hbm [shape: f32[64,128], index: 1, kind: input, shape index: {}]
  %s2 = inlined_call_operand.hbm [shape: f32[16,128], index: 2, kind: output, shape index: {}]
  %s3 = sld [smem:[#allocation0]]
  $region22: #{tpu_custom_call.1} parent=0
    _
  %s5 = ssub.s32 1, %s3
  %s6 = scalar_select 0, %s5, %s3
  $region1: #{tpu_custom_call.1} parent=0
    #allocation2 [shape = 'u8[32768]{0}', space=vmem, size = 0x8000, scoped, tag = 'input window, operand 1, single buffered']
    #allocation3 [shape = 's32[1]{0}', space=sflag, size = 0x4, scoped, tag = 'scoped memory for tpu_custom_call.1']
    #allocation4 [shape = 's32[1]{0}', space=sflag, size = 0x4, scoped, tag = 'scoped memory for tpu_custom_call.1']
    #allocation5 [shape = 'u8[8192]{0}', space=vmem, size = 0x2000, scoped, tag = 'output window, operand 0, single buffered']
    %7 = vsyncpa [#allocation3], 0
    %8 = vsyncpa [#allocation4], 0
    // Predicated region
    $region2: #{tpu_custom_call.1} parent=1 // pred_check
      _
    $region3: #{tpu_custom_call.1} parent=1 // pred_check_branch
      %10 = sbr.rel (0) target = $region5
    $region4: #{tpu_custom_call.1} parent=1 // pred_region
      _
    $region5: #{tpu_custom_call.1} parent=1 // pred_fallthru
      _
    // Predicated region
    $region6: #{tpu_custom_call.1} parent=1 // pred_check
      _
    $region7: #{tpu_custom_call.1} parent=1 // pred_check_branch
      %12 = sbr.rel (0) target = $region9
    $region8: #{tpu_custom_call.1} parent=1 // pred_region
      %s14 = ssub.s32 1024, 1024
      %15 = vsyncadd [#allocation3], %s14
      %s16 = sshll.u32 [#allocation2], 4
      %s17 = int_to_ptr.vmem [resolvable:$true] %s16
      %22 = dma.hbm_to_vmem [thread:$0]  %s1, 1024, %s17, [#allocation3], 128, 128, 8
    $region9: #{tpu_custom_call.1} parent=1 // pred_fallthru
      _
    // Predicated region
    $region10: #{tpu_custom_call.1} parent=1 // pred_check
      _
    $region11: #{tpu_custom_call.1} parent=1 // pred_check_branch
      %24 = sbr.rel (0) target = $region13
    $region12: #{tpu_custom_call.1} parent=1 // pred_region
      %25 = dma.done [#allocation3], 1024
    $region13: #{tpu_custom_call.1} parent=1 // pred_fallthru
      _
    %v26 = vld [vmem:[%s0] sm:$0xff]
    %v27 = vld [vmem:[%s0 + $0x8] sm:$0xff]
    %vm28 = vcmp.gt.s32.totalorder %v26, 0
    %v29 = vsel %vm28, %v26, 0
    %vm30 = vcmp.gt.s32.totalorder %v27, 0
    %v31 = vsel %vm30, %v27, 0
    %vm32 = vcmp.lt.s32.totalorder %v29, 63
    %v33 = vsel %vm32, %v29, 63
    %vm34 = vcmp.lt.s32.totalorder %v31, 63
    %v35 = vsel %vm34, %v31, 63
    %v36 = vlaneseq
    %v37 = vand.u32 %v36, 127
    %38 = vset.pattern.permute.xlu0 0
    %39 = vperm.xlu0 %38, %v33
    %v40 = vpop.permute.xlu0 %39
    %41 = vset.pattern.permute.xlu0 0
    %42 = vperm.xlu0 %41, %v35
    %v43 = vpop.permute.xlu0 %42
    %vm44 = vcmp.eq.s32.totalorder %v37, %v40
    %vm45 = vcmp.eq.s32.totalorder %v37, %v43
    %v46 = vsel %vm44, 1, 0
    %v47 = vsel %vm45, 1, 0
    %v48 = vcvt.s32.f32 %v46
    %v49 = vcvt.s32.f32 %v47
    %v50 = vld [vmem:[#allocation2] sm:$0xff]
    %v51 = vld [vmem:[#allocation2 + $0x8] sm:$0xff]
    %v52 = vld [vmem:[#allocation2 + $0x10] sm:$0xff]
    %v53 = vld [vmem:[#allocation2 + $0x18] sm:$0xff]
    %v54 = vld [vmem:[#allocation2 + $0x20] sm:$0xff]
    %v55 = vld [vmem:[#allocation2 + $0x28] sm:$0xff]
    %v56 = vld [vmem:[#allocation2 + $0x30] sm:$0xff]
    %v57 = vld [vmem:[#allocation2 + $0x38] sm:$0xff]
    %vm58 = vcmask 523264
    %v60 = vsel %vm58, %v48, 0
    %v63 = vsel %vm58, %v49, 0
    %65 = vmatprep.subr.mxu0 0.0
    %66 = vmatpush1.msra.mxu0 0.0
    %67 = vmatprep.subr.mxu0 0.0
    %68 = vmatpush1.msra.mxu0 0.0
    %69 = vmatprep.subr.mxu0 0.0
    %70 = vmatpush1.msra.mxu0 0.0
    %71 = vmatprep.subr.mxu0 0.0
    %72 = vmatpush1.msra.mxu0 0.0
    %73 = vmatprep.subr.mxu0 0.0
    %74 = vmatpush1.msra.mxu0 0.0
    %75 = vmatprep.subr.mxu0 0.0
    %76 = vmatpush1.msra.mxu0 0.0
    %77 = vmatprep.subr.mxu0 0.0
    %78 = vmatpush1.msra.mxu0 0.0
    %79 = vmatprep.subr.mxu0 0.0
    %80 = vmatpush1.msra.mxu0 0.0
    %81 = vmatprep.subr.mxu0 0.0
    %82 = vmatpush1.msra.mxu0 %v57
    %83 = vmatprep.subr.mxu0 0.0
    %84 = vmatpush1.msra.mxu0 %v56
    %85 = vmatprep.subr.mxu0 0.0
    %86 = vmatpush1.msra.mxu0 %v55
    %87 = vmatprep.subr.mxu0 0.0
    %88 = vmatpush1.msra.mxu0 %v54
    %89 = vmatprep.subr.mxu0 0.0
    %90 = vmatpush1.msra.mxu0 %v53
    %91 = vmatprep.subr.mxu0 0.0
    %92 = vmatpush1.msra.mxu0 %v52
    %93 = vmatprep.subr.mxu0 0.0
    %94 = vmatpush1.msra.mxu0 %v51
    %95 = vmatprep.subr.mxu0 0.0
    %96 = vmatpush1.msra.mxu0 %v50
    %97 = vmatprep.subr.mxu0 0.0
    %98 = vmatpush2.msra.mxu0 0.0
    %99 = vmatprep.subr.mxu0 0.0
    %100 = vmatpush2.msra.mxu0 0.0
    %101 = vmatprep.subr.mxu0 0.0
    %102 = vmatpush2.msra.mxu0 0.0
    %103 = vmatprep.subr.mxu0 0.0
    %104 = vmatpush2.msra.mxu0 0.0
    %105 = vmatprep.subr.mxu0 0.0
    %106 = vmatpush2.msra.mxu0 0.0
    %107 = vmatprep.subr.mxu0 0.0
    %108 = vmatpush2.msra.mxu0 0.0
    %109 = vmatprep.subr.mxu0 0.0
    %110 = vmatpush2.msra.mxu0 0.0
    %111 = vmatprep.subr.mxu0 0.0
    %112 = vmatpush2.msra.mxu0 0.0
    %113 = vmatprep.subr.mxu0 0.0
    %114 = vmatpush2.msra.mxu0 0.0
    %115 = vmatprep.subr.mxu0 0.0
    %116 = vmatpush2.msra.mxu0 0.0
    %117 = vmatprep.subr.mxu0 0.0
    %118 = vmatpush2.msra.mxu0 0.0
    %119 = vmatprep.subr.mxu0 0.0
    %120 = vmatpush2.msra.mxu0 0.0
    %121 = vmatprep.subr.mxu0 0.0
    %122 = vmatpush2.msra.mxu0 0.0
    %123 = vmatprep.subr.mxu0 0.0
    %124 = vmatpush2.msra.mxu0 0.0
    %125 = vmatprep.subr.mxu0 0.0
    %126 = vmatpush2.msra.mxu0 0.0
    %127 = vmatprep.subr.mxu0 0.0
    %128 = vmatpush2.msra.mxu0 0.0
    %129 = vmatprep.mubr.f32.mxu0 0.0
    %130 = vmatmul.mubr.f32.gmra.mxu0 %v60
    %v131 = vpop.f32.mrf.mxu0
    %v132 = vadd.f32 0.0, %v131
    %v133 = vpop.f32.mrf.mxu0
    %134 = vmatprep.mubr.f32.mxu0 0.0
    %135 = vmatmul.mubr.f32.gmra.mxu0 %v63
    %v136 = vpop.f32.mrf.mxu0
    %v137 = vadd.f32 0.0, %v136
    %v138 = vpop.f32.mrf.mxu0
    %139 = vdwg.mxu0
    %140 = vst [vmem:[#allocation5] sm:$0xff] %v132
    %141 = vst [vmem:[#allocation5 + $0x8] sm:$0xff] %v137
    // Predicated region
    $region14: #{tpu_custom_call.1} parent=1 // pred_check
      _
    $region15: #{tpu_custom_call.1} parent=1 // pred_check_branch
      %143 = sbr.rel (0) target = $region17
    $region16: #{tpu_custom_call.1} parent=1 // pred_region
      %s145 = ssub.s32 256, 256
      %146 = vsyncadd [#allocation4], %s145
      %s147 = sshll.u32 [#allocation5], 4
      %s148 = int_to_ptr.vmem [resolvable:$true] %s147
      %153 = dma.vmem_to_hbm [thread:$0]  %s148, 256, %s2, [#allocation4], 128, 128, 8
    $region17: #{tpu_custom_call.1} parent=1 // pred_fallthru
      _
    // Predicated region
    $region18: #{tpu_custom_call.1} parent=1 // pred_check
      _
    $region19: #{tpu_custom_call.1} parent=1 // pred_check_branch
      %155 = sbr.rel (0) target = $region21
    $region20: #{tpu_custom_call.1} parent=1 // pred_region
      %156 = dma.done [#allocation4], 256
    $region21: #{tpu_custom_call.1} parent=1 // pred_fallthru
      _
    %157 = vsyncpa [#allocation3], 1
    %158 = vsyncpa [#allocation4], 1

</llo_original>
